<compile_context>
chip_gen: v5e
topology: v5e:2x2
jax: 0.10.0
libtpu: 0.0.40
codegen_flags: <defaults>
</compile_context>

<pallas_src>
import jax
import jax.numpy as jnp
from jax.experimental import pallas as pl
from jax.experimental.pallas import tpu as pltpu


def _shuffle_kernel(x_ref, o_ref):
    """x_ref: (1, g, cpg, t_hw), o_ref: (1, cpg, g, t_hw).

    Swap the (g, cpg) channel sub-axes.  Lane axis (t_hw) is untouched, so
    loads and stores are full unmasked vregs; the permutation is a sublane /
    major-axis relayout on the vector side.
    """
    o_ref[...] = jnp.swapaxes(x_ref[...], 1, 2)


def _choose_hw_tile(hw, c, itemsize, n_batch):
    """Pick an HW (lane) tile: multiple of 128, ~3 MiB per pipeline buffer."""
    budget_bytes = 3 * 1024 * 1024  # per buffer; 2 in + 2 out buffers in flight
    max_lanes = max(128, (budget_bytes // max(1, c * itemsize)) // 128 * 128)
    t = min(4096, max_lanes)
    if hw <= t:
        if n_batch == 1 and hw >= 256:
            # Megacore (v7x): make sure the grid has >= 2 work units for N=1.
            return ((hw + 255) // 256) * 128
        # Single block covering full HW: "block == full dim" escape hatch keeps
        # this legal even when HW is not a multiple of 128.
        return hw
    # t is a multiple of 128; the last grid step carries the masked remainder.
    return t


def shuffle_block(x, groups, *, hw_tile=None):
    """Channel shuffle. x: (N, C, H, W) -> (N, C, H, W)."""
    N, C, H, W = x.shape
    assert C % groups == 0, "C must be divisible by groups"
    g = groups
    cpg = C // g
    HW = H * W
    itemsize = jnp.dtype(x.dtype).itemsize

    # Free, contiguous reshapes on the host side of the kernel.
    x_grouped = x.reshape(N, g, cpg, HW)

    t_hw = hw_tile if hw_tile is not None else _choose_hw_tile(HW, C, itemsize, N)
    n_hw = pl.cdiv(HW, t_hw)

    out_grouped = pl.pallas_call(
        _shuffle_kernel,
        out_shape=jax.ShapeDtypeStruct((N, cpg, g, HW), x.dtype),
        grid_spec=pltpu.PrefetchScalarGridSpec(
            num_scalar_prefetch=0,
            grid=(N, n_hw),
            in_specs=[pl.BlockSpec((1, g, cpg, t_hw), lambda n, s: (n, 0, 0, s))],
            out_specs=pl.BlockSpec((1, cpg, g, t_hw), lambda n, s: (n, 0, 0, s)),
        ),
        compiler_params=pltpu.CompilerParams(
            # Both axes independent -> shard across TensorCores (v7x megacore).
            dimension_semantics=("parallel", "parallel"),
            # Explicit limit: safe on every generation, covers large-C configs
            # that would otherwise brush v5e's 16 MiB scoped default.
            vmem_limit_bytes=32 * 1024 * 1024,
        ),
        # Pure data movement: 1 read + 1 write pass over the activation.
        cost_estimate=pl.CostEstimate(
            flops=0,
            transcendentals=0,
            bytes_accessed=2 * N * C * HW * itemsize,
        ),
    )(x_grouped)

    # (N, cpg, g, HW) -> (N, C, H, W): exactly the PyTorch permute+view result.
    return out_grouped.reshape(N, C, H, W)


def _reference_shuffle(x, groups):
    N, C, H, W = x.shape
    g = groups
    return (
        x.reshape(N, g, C // g, H, W)
        .transpose(0, 2, 1, 3, 4)
        .reshape(N, C, H, W)
    )


if __name__ == "__main__":
    key = jax.random.PRNGKey(0)

    # (N, C, H, W, groups, hw_tile, dtype)
    configs = [
        (2, 4, 16, 16, 2, None, jnp.float32),   # cpg == g, single full-HW tile
        (2, 8, 20, 20, 2, 128, jnp.float32),    # g < cpg, 4 HW tiles, masked tail
        (1, 12, 8, 8, 3, None, jnp.float32),    # HW < 128 -> full-dim HW block
        (1, 16, 24, 24, 4, None, jnp.float32),  # N=1 megacore split (>=2 HW tiles)
        (2, 8, 16, 16, 4, None, jnp.bfloat16),  # sub-32-bit dtype path
    ]

    for idx, (N, C, H, W, g, t, dt) in enumerate(configs):
        key, sub = jax.random.split(key)
        x = jax.random.normal(sub, (N, C, H, W), dtype=jnp.float32).astype(dt)

        out = jax.block_until_ready(shuffle_block(x, g, hw_tile=t))
        ref = _reference_shuffle(x, g)

        assert out.shape == x.shape, f"shape mismatch on config {idx}"
        assert out.dtype == x.dtype, f"dtype mismatch on config {idx}"
        assert jnp.array_equal(out, ref), f"Pallas channel shuffle mismatch on config {idx}"

    print("KERNEL_OK")
</pallas_src>

<mosaic_0001>
module attributes {stable_mosaic.version = 11 : i64} {
  func.func @_shuffle_kernel(%arg0: i32, %arg1: i32, %arg2: memref<1x2x2x256xf32, #tpu.memory_space<vmem>>, %arg3: memref<1x2x2x256xf32, #tpu.memory_space<vmem>>) attributes {dimension_semantics = [#tpu.dimension_semantics<parallel>, #tpu.dimension_semantics<parallel>], iteration_bounds = array<i64: 2, 1>, scalar_prefetch = 0 : i64, scratch_operands = 0 : i64, tpu.core_type = #tpu.core_type<tc>, window_params = [{transform_indices = @transform_0, window_bounds = array<i64: 1, 2, 2, 256>}, {transform_indices = @transform_1, window_bounds = array<i64: 1, 2, 2, 256>}]} {
    %c0 = arith.constant 0 : index
    %c0_0 = arith.constant 0 : index
    %c0_1 = arith.constant 0 : index
    %c0_2 = arith.constant 0 : index
    %0 = vector.load %arg2[%c0, %c0_0, %c0_1, %c0_2] : memref<1x2x2x256xf32, #tpu.memory_space<vmem>>, vector<1x2x2x256xf32>
    %1 = tpu.transpose %0, [0, 2, 1, 3] : vector<1x2x2x256xf32> -> vector<1x2x2x256xf32>
    %c0_3 = arith.constant 0 : index
    %c0_4 = arith.constant 0 : index
    %c0_5 = arith.constant 0 : index
    %c0_6 = arith.constant 0 : index
    %2 = vector.load %arg3[%c0_3, %c0_4, %c0_5, %c0_6] : memref<1x2x2x256xf32, #tpu.memory_space<vmem>>, vector<1x2x2x256xf32>
    tpu.vector_store %arg3[%c0_3, %c0_4, %c0_5, %c0_6], %1 {strides = array<i32>} : memref<1x2x2x256xf32, #tpu.memory_space<vmem>>, vector<1x2x2x256xf32>,
    return
  }
  func.func @transform_0(%arg0: i32, %arg1: i32) -> (i32, i32, i32, i32) {
    %c0_i32 = arith.constant 0 : i32
    %c0_i32_0 = arith.constant 0 : i32
    %c0_i32_1 = arith.constant 0 : i32
    return %arg0, %c0_i32, %c0_i32_0, %arg1 : i32, i32, i32, i32
  }
  func.func @transform_1(%arg0: i32, %arg1: i32) -> (i32, i32, i32, i32) {
    %c0_i32 = arith.constant 0 : i32
    %c0_i32_0 = arith.constant 0 : i32
    %c0_i32_1 = arith.constant 0 : i32
    return %arg0, %c0_i32, %c0_i32_0, %arg1 : i32, i32, i32, i32
  }
}

</mosaic_0001>

<llo_original>
// kernel: tpu_custom_call.1
$region0: #{tpu_custom_call.1}
  #allocation0 [shape = 'u32[]', space=smem, size = 0x4, offset = 0x4, fixed_abs, tag = 'smem constant byte address 0x4 - core index']
  #allocation1 [shape = 'u32[72,128]{1,0:T(1,128)}', space=vmem, size = 0x9000, scoped, tag = 'internal scratch']
  %s0 = inlined_call_operand.hbm [shape: f32[2,2,2,256], index: 0, kind: input, shape index: {}]
  %s1 = inlined_call_operand.hbm [shape: f32[2,2,2,256], index: 1, kind: output, shape index: {}]
  %s2 = sld [smem:[#allocation0]]
  $region41: #{tpu_custom_call.1} parent=0
    _
  %s4 = ssub.s32 1, %s2
  %s5 = scalar_select 0, %s4, %s2
  $region1: #{tpu_custom_call.1} parent=0
    #allocation2 [shape = 'u8[8192]{0}', space=vmem, size = 0x2000, scoped, tag = 'input window, operand 0']
    #allocation3 [shape = 's32[2]{0}', space=sflag, size = 0x8, scoped, tag = 'scoped memory for tpu_custom_call.1']
    #allocation4 [shape = 's32[2]{0}', space=sflag, size = 0x8, scoped, tag = 'scoped memory for tpu_custom_call.1']
    #allocation5 [shape = 'u8[8192]{0}', space=vmem, size = 0x2000, scoped, tag = 'output window, operand 0']
    %6 = vsyncpa [#allocation3], 0
    %s7 = scalar_lea.sflag [#allocation3], 1
    %8 = vsyncpa %s7, 0
    %9 = vsyncpa [#allocation4], 0
    %s10 = scalar_lea.sflag [#allocation4], 1
    %11 = vsyncpa %s10, 0
    loop: start=0, step=1, limit=4
    $region2: #{tpu_custom_call.1} parent=1 // loop_pre_header
      _
    $region3: #{tpu_custom_call.1} parent=1 // loop_header
      %s13 = sphi 0, %s17
      %p14 = scmp.ge.s32.totalorder %s13, 4
      %s20 = sphi 0, %s32
      %s21 = sphi 0, %s28
      %s22 = sphi 0, %s20
      %s23 = sphi 0, %s21
      %s24 = sphi 0, %s22
      %s25 = sphi 0, %s23
      %s37 = sphi 0, %s39
      %s40 = sphi 0, %s37
      %s41 = sphi 0, %s40
      %s57 = sphi 0, %s41
      %s65 = sphi 0, %s67
      %s68 = sphi 0, %s65
      %s69 = sphi 0, %s68
      %s85 = sphi 0, %s69
    $region4: #{tpu_custom_call.1} parent=1 // loop_header_branch
      %16 = sbr.rel (%p14) target = $region8
    $region5: #{tpu_custom_call.1} parent=1 // loop_body
      %s18 = ssub.s32 %s13, 1
      %s19 = ssub.s32 %s13, 2
      %s26 = sadd.s32 1, %s21
      %p27 = scmp.ge.s32.totalorder %s26, 1
      %s28 = scalar_select %p27, 0, %s26
      %s29 = sadd.s32 1, %s20
      %s30 = scalar_select %p27, %s29, %s20
      %p31 = scmp.ge.s32.totalorder %s30, 2
      %s32 = scalar_select %p31, 0, %s30
      %s33 = ssub.s32 %s20, %s32
      %s34 = ssub.s32 %s21, %s28
      %s35 = sor.u32 %s33, %s34
      %p36 = scmp.eq.s32.totalorder %s35, 0
      %s38 = sadd.s32 %s37, 1
      %s39 = scalar_select %p36, %s37, %s38
      %p42 = pneg %p36
      %p43 = scmp.eq.s32.totalorder %s13, 1
      %p44 = por %p42, %p43
      %p45 = scmp.ne.s32.totalorder %s37, %s40
      %p46 = scmp.eq.s32.totalorder %s13, 0
      %p47 = por %p45, %p46
      %p48 = scmp.ne.s32.totalorder %s37, %s40
      %p49 = scmp.eq.s32.totalorder %s18, 1
      %p50 = por %p48, %p49
      %p51 = scmp.ne.s32.totalorder %s40, %s41
      %p52 = scmp.eq.s32.totalorder %s18, 0
      %p53 = por %p51, %p52
      %p54 = scmp.ne.s32.totalorder %s40, %s41
      %p55 = scmp.eq.s32.totalorder %s19, 1
      %p56 = por %p54, %p55
      %p58 = scmp.ne.s32.totalorder %s41, %s57
      %p59 = scmp.eq.s32.totalorder %s19, 0
      %p60 = por %p58, %p59
      %s61 = ssub.s32 %s20, %s32
      %s62 = ssub.s32 %s21, %s28
      %s63 = sor.u32 %s61, %s62
      %p64 = scmp.eq.s32.totalorder %s63, 0
      %s66 = sadd.s32 %s65, 1
      %s67 = scalar_select %p64, %s65, %s66
      %p70 = pneg %p64
      %p71 = scmp.eq.s32.totalorder %s13, 1
      %p72 = por %p70, %p71
      %p73 = scmp.ne.s32.totalorder %s65, %s68
      %p74 = scmp.eq.s32.totalorder %s13, 0
      %p75 = por %p73, %p74
      %p76 = scmp.ne.s32.totalorder %s65, %s68
      %p77 = scmp.eq.s32.totalorder %s18, 1
      %p78 = por %p76, %p77
      %p79 = scmp.ne.s32.totalorder %s68, %s69
      %p80 = scmp.eq.s32.totalorder %s18, 0
      %p81 = por %p79, %p80
      %p82 = scmp.ne.s32.totalorder %s68, %s69
      %p83 = scmp.eq.s32.totalorder %s19, 1
      %p84 = por %p82, %p83
      %p86 = scmp.ne.s32.totalorder %s69, %s85
      %p87 = scmp.eq.s32.totalorder %s19, 0
      %p88 = por %p86, %p87
      %p89 = scmp.le.s32.totalorder 1, %s13
      %p90 = scmp.lt.s32.totalorder %s13, 3
      %p91 = pnand %p89, %p90
      %p92 = pneg %p91
      // Predicated region
      $region9: #{tpu_custom_call.1} parent=5 // pred_check
        _
      $region10: #{tpu_custom_call.1} parent=5 // pred_check_branch
        %94 = sbr.rel (%p91) target = $region12
      $region11: #{tpu_custom_call.1} parent=5 // pred_region
        %s95 = ssub.s32 %s13, 1
      $region12: #{tpu_custom_call.1} parent=5 // pred_fallthru
        _
      %p96 = scmp.lt.s32.totalorder %s13, 2
      // Predicated region
      $region13: #{tpu_custom_call.1} parent=5 // pred_check
        %p97 = pneg %p96
      $region14: #{tpu_custom_call.1} parent=5 // pred_check_branch
        %99 = sbr.rel (%p97) target = $region16
      $region15: #{tpu_custom_call.1} parent=5 // pred_region
        // Predicated region
        $region17: #{tpu_custom_call.1} parent=15 // pred_check
          %p100 = pneg %p47
        $region18: #{tpu_custom_call.1} parent=15 // pred_check_branch
          %102 = sbr.rel (%p100) target = $region20
        $region19: #{tpu_custom_call.1} parent=15 // pred_region
          %s103 = sand.u32 %s37, 1
          %s104 = scalar_lea.sflag [#allocation3], %s103
          %s105 = sand.u32 %s37, 1
          %s106 = smul.addr %s105, 8
          %s107 = scalar_lea.vmem [#allocation2], %s106
          %s108 = smul.u32 2, %s21
          %110 = vsyncadd %s104, 0
          %s111 = smul.addr %s20, 4
          %s112 = sadd.s32 %s108, %s111
          %s113 = smul.addr %s112, 2
          %s114 = scalar_lea.hbm %s0, %s113
          %s115 = sshll.u32 %s114, 4
          %s116 = int_to_ptr.hbm [resolvable:$true] %s115
          %s117 = sshll.u32 %s107, 4
          %s118 = int_to_ptr.vmem [resolvable:$true] %s117
          %123 = dma.hbm_to_vmem [thread:$0]  %s116, 128, %s118, %s104, 64, 64, 4
        $region20: #{tpu_custom_call.1} parent=15 // pred_fallthru
          _
      $region16: #{tpu_custom_call.1} parent=5 // pred_fallthru
        _
      %p124 = scmp.le.s32.totalorder 1, %s13
      %p125 = scmp.lt.s32.totalorder %s13, 3
      %p126 = pnand %p124, %p125
      %p127 = pneg %p126
      // Predicated region
      $region21: #{tpu_custom_call.1} parent=5 // pred_check
        _
      $region22: #{tpu_custom_call.1} parent=5 // pred_check_branch
        %129 = sbr.rel (%p126) target = $region24
      $region23: #{tpu_custom_call.1} parent=5 // pred_region
        %s130 = ssub.s32 %s13, 1
        %s131 = sand.u32 %s40, 1
        %s132 = scalar_lea.sflag [#allocation3], %s131
        %s133 = sand.u32 %s40, 1
        %s134 = smul.addr %s133, 8
        %s135 = scalar_lea.vmem [#allocation2], %s134
        // Predicated region
        $region25: #{tpu_custom_call.1} parent=23 // pred_check
          %p136 = pneg %p53
        $region26: #{tpu_custom_call.1} parent=23 // pred_check_branch
          %138 = sbr.rel (%p136) target = $region28
        $region27: #{tpu_custom_call.1} parent=23 // pred_region
          %140 = dma.done %s132, 128
        $region28: #{tpu_custom_call.1} parent=23 // pred_fallthru
          _
        %s141 = sand.u32 %s40, 1
        %s142 = scalar_lea.sflag [#allocation3], %s141
        %s143 = sand.u32 %s40, 1
        %s144 = smul.addr %s143, 8
        %s145 = scalar_lea.vmem [#allocation2], %s144
        %p146 = pneg %p53
        %p147 = pneg %p50
        %p148 = pneg %p81
        %p149 = pneg %p78
        %s150 = sand.u32 %s68, 1
        %s151 = scalar_lea.sflag [#allocation4], %s150
        %s152 = sand.u32 %s68, 1
        %s153 = smul.addr %s152, 8
        %s154 = scalar_lea.vmem [#allocation5], %s153
        %s155 = smul.u32 2, %s23
        %s156 = smul.u32 2, %s23
        %v157 = vld [vmem:[%s135] sm:$0xf]
        %v158 = vld [vmem:[%s135 + $0x4] sm:$0xf]
        %v159 = vrot.slane %v158, 4
        %vm160 = vcmask 1047556
        %v161 = vsel %vm160, %v159, %v157
        %v163 = vunpack.c.l.s4 1934713408
        %v164 = vunpack.c.0.s8 %v163
        %v165 = vperm.slane %v161, %v164
        %v166 = vrot.slane %v165, 4
        %v167 = vsel %vm160, 0.0, %v166
        %168 = vst [vmem:[%s154] sm:$0xf] %v165
        %169 = vst [vmem:[%s154 + $0x4] sm:$0xf] %v167
        %s170 = sand.u32 %s68, 1
        %s171 = scalar_lea.sflag [#allocation4], %s170
        %s172 = sand.u32 %s68, 1
        %s173 = smul.addr %s172, 8
        %s174 = scalar_lea.vmem [#allocation5], %s173
        // Predicated region
        $region29: #{tpu_custom_call.1} parent=23 // pred_check
          %p175 = pneg %p78
        $region30: #{tpu_custom_call.1} parent=23 // pred_check_branch
          %177 = sbr.rel (%p175) target = $region32
        $region31: #{tpu_custom_call.1} parent=23 // pred_region
          %s178 = smul.u32 2, %s23
          %180 = vsyncadd %s171, 0
          %s181 = smul.addr %s22, 4
          %s182 = sadd.s32 %s178, %s181
          %s183 = smul.addr %s182, 2
          %s184 = scalar_lea.hbm %s1, %s183
          %s185 = sshll.u32 %s174, 4
          %s186 = int_to_ptr.vmem [resolvable:$true] %s185
          %s187 = sshll.u32 %s184, 4
          %s188 = int_to_ptr.hbm [resolvable:$true] %s187
          %193 = dma.vmem_to_hbm [thread:$0]  %s186, 128, %s188, %s171, 64, 64, 4
        $region32: #{tpu_custom_call.1} parent=23 // pred_fallthru
          _
      $region24: #{tpu_custom_call.1} parent=5 // pred_fallthru
        _
      %p194 = scmp.le.s32.totalorder 2, %s13
      // Predicated region
      $region33: #{tpu_custom_call.1} parent=5 // pred_check
        %p195 = pneg %p194
      $region34: #{tpu_custom_call.1} parent=5 // pred_check_branch
        %197 = sbr.rel (%p195) target = $region36
      $region35: #{tpu_custom_call.1} parent=5 // pred_region
        %s198 = ssub.s32 %s13, 2
        // Predicated region
        $region37: #{tpu_custom_call.1} parent=35 // pred_check
          %p199 = pneg %p84
        $region38: #{tpu_custom_call.1} parent=35 // pred_check_branch
          %201 = sbr.rel (%p199) target = $region40
        $region39: #{tpu_custom_call.1} parent=35 // pred_region
          %s202 = sand.u32 %s69, 1
          %s203 = scalar_lea.sflag [#allocation4], %s202
          %s204 = sand.u32 %s69, 1
          %s205 = smul.addr %s204, 8
          %s206 = scalar_lea.vmem [#allocation5], %s205
          %208 = dma.done %s203, 128
        $region40: #{tpu_custom_call.1} parent=35 // pred_fallthru
          _
      $region36: #{tpu_custom_call.1} parent=5 // pred_fallthru
        _
    $region6: #{tpu_custom_call.1} parent=1 // loop_footer
      %s17 = sadd.s32 1, %s13
    $region7: #{tpu_custom_call.1} parent=1 // loop_footer_branch
      %12 = sbr.rel target = $region3
    $region8: #{tpu_custom_call.1} parent=1 // loop_exit
      _
    %209 = vsyncpa [#allocation3], 1
    %s210 = scalar_lea.sflag [#allocation3], 1
    %211 = vsyncpa %s210, 1
    %212 = vsyncpa [#allocation4], 1
    %s213 = scalar_lea.sflag [#allocation4], 1
    %214 = vsyncpa %s213, 1

</llo_original>
